<compile_context>
chip_gen: v5e
topology: v5e:2x2
jax: 0.10.0
libtpu: 0.0.40
codegen_flags: <defaults>
</compile_context>

<pallas_src>
import jax
import jax.numpy as jnp
from jax.experimental import pallas as pl
from jax.experimental.pallas import tpu as pltpu


def _patch_pos_enc_kernel(x_ref, row0_ref, pos_body_ref, o_ref):
    # x_ref:        (TB, N*D)       flattened patch sequences for TB batch rows
    # row0_ref:     (1,  D)         precomputed cls_token + pos_embed[:, 0, :]
    # pos_body_ref: (1,  N*D)       pos_embed[:, 1:, :] flattened (grid-invariant)
    # o_ref:        (TB, (N+1)*D)   flattened output sequences
    tb = x_ref.shape[0]
    d = row0_ref.shape[-1]
    # First D lanes of every output row: the shared (cls + pos[0]) vector.
    # NOTE: for D % 128 != 0 these are lane-misaligned stores; negligible while
    # HBM-bound (per review), and they vanish for production D % 128 == 0.
    o_ref[:, :d] = jnp.broadcast_to(row0_ref[...], (tb, d))
    # Remaining N*D lanes: aligned full-width loads, one wide store.
    o_ref[:, d:] = x_ref[...] + pos_body_ref[...]


def _jnp_fallback(x, cls_token, pos_embed):
    B, _, D = x.shape
    cls_tokens = jnp.broadcast_to(cls_token.astype(x.dtype), (B, 1, D))
    return jnp.concatenate([cls_tokens, x], axis=1) + pos_embed.astype(x.dtype)


def _tpu_generation():
    """Generation-aware VMEM budget / limit / core count (safe defaults)."""
    kind = ""
    try:
        kind = jax.devices()[0].device_kind.lower()
    except Exception:
        pass
    if "v7" in kind:
        # 64 MiB physical VMEM, 2 TensorCores per chip.
        return {"num_tensorcores": 2,
                "tile_budget": 20 * 1024 * 1024,
                "vmem_limit": 48 * 1024 * 1024}
    # v5e / v6e (and unknown): 128 MiB physical VMEM, 1 TensorCore.
    return {"num_tensorcores": 1,
            "tile_budget": 40 * 1024 * 1024,
            "vmem_limit": 96 * 1024 * 1024}


def patch_positional_encoding(x, cls_token, pos_embed, *, batch_tile=None,
                              min_pallas_bytes=256 * 1024,
                              vmem_limit_bytes=None):
    """x: [B, N, D]; cls_token: [1, 1, D]; pos_embed: [1, N+1, D] -> [B, N+1, D]."""
    B, N, D = x.shape
    assert cls_token.shape == (1, 1, D)
    assert pos_embed.shape == (1, N + 1, D)

    itemsize = jnp.dtype(x.dtype).itemsize
    total_traffic = itemsize * (B * N * D + B * (N + 1) * D + (N + 1) * D + D)

    # Tiny-problem fallback: pallas_call dispatch + per-step overhead dominates
    # when the whole problem is a few KB; XLA's fused concat+add is fine there.
    if total_traffic < min_pallas_bytes:
        return _jnp_fallback(x, cls_token, pos_embed)

    hw = _tpu_generation()
    if vmem_limit_bytes is None:
        vmem_limit_bytes = hw["vmem_limit"]

    # Per-grid-step VMEM, counting EVERY double-buffered block:
    #   x tile + out tile (scale with TB), pos_body + row0 (grid-invariant).
    per_row_bytes = 2 * (N * D + (N + 1) * D) * itemsize          # x + out
    fixed_bytes = 2 * (N * D + D) * itemsize                      # pos_body + row0

    if batch_tile is None:
        budget = hw["tile_budget"]
        tb_budget = (budget - fixed_bytes) // max(per_row_bytes, 1)
        if tb_budget < 1:
            # A single flattened row does not fit the budget.
            # TODO(synk): add a lane-chunked grid=(B_tiles, chunk_tiles) path
            # (row0 written under @pl.when(chunk == 0)) instead of XLA fallback.
            return _jnp_fallback(x, cls_token, pos_embed)
        tb = min(int(tb_budget), B)
        # v7x megacore: keep >= 2 grid steps so both TensorCores get work.
        if hw["num_tensorcores"] > 1 and B >= 2:
            tb = min(tb, pl.cdiv(B, hw["num_tensorcores"]))
        # Dtype-aware sublane alignment; round DOWN only (never exceed budget).
        sublane_align = max(8, 32 // itemsize)   # 8 f32, 16 bf16, 32 int8/fp8
        if tb > sublane_align:
            tb = (tb // sublane_align) * sublane_align
        batch_tile = max(1, min(tb, B))
    TB = int(batch_tile)

    # Wrapper-side precompute (O(N*D) parameter-only work): removes the
    # sublane-offset-1 access pattern and the cls_token DMA stream.
    row0 = (cls_token[:, 0, :] + pos_embed[:, 0, :]).astype(x.dtype)      # (1, D)
    pos_body = pos_embed[:, 1:, :].reshape(1, N * D).astype(x.dtype)      # (1, N*D)
    x_flat = x.reshape(B, N * D)                                          # free view

    grid = (pl.cdiv(B, TB),)

    cost = pl.CostEstimate(
        flops=B * (N + 1) * D,
        transcendentals=0,
        bytes_accessed=total_traffic,
    )

    out_flat = pl.pallas_call(
        _patch_pos_enc_kernel,
        out_shape=jax.ShapeDtypeStruct((B, (N + 1) * D), x.dtype),
        grid_spec=pltpu.PrefetchScalarGridSpec(
            num_scalar_prefetch=0,
            grid=grid,
            in_specs=[
                pl.BlockSpec((TB, N * D), lambda b: (b, 0)),       # x (per batch tile)
                pl.BlockSpec((1, D), lambda b: (0, 0)),            # row0 (shared)
                pl.BlockSpec((1, N * D), lambda b: (0, 0)),        # pos body (shared)
            ],
            out_specs=pl.BlockSpec((TB, (N + 1) * D), lambda b: (b, 0)),
        ),
        compiler_params=pltpu.CompilerParams(
            dimension_semantics=("parallel",),
            vmem_limit_bytes=int(vmem_limit_bytes),
        ),
        cost_estimate=cost,
    )(x_flat, row0, pos_body)

    return out_flat.reshape(B, N + 1, D)


def reference(x, cls_token, pos_embed):
    B = x.shape[0]
    cls_tokens = jnp.broadcast_to(cls_token, (B, 1, x.shape[2]))
    return jnp.concatenate([cls_tokens, x], axis=1) + pos_embed


if __name__ == "__main__":
    # Module config: embedding_dimension=32, image_size=16, patch_size=4
    # -> num_patches = (16 // 4) ** 2 = 16
    embedding_dimension = 32
    image_size = 16
    patch_size = 4
    num_patches = (image_size // patch_size) ** 2  # 16
    B = 2

    key = jax.random.PRNGKey(0)
    k_x, k_cls, k_pos = jax.random.split(key, 3)

    # Deterministic "parameters" (torch.randn analogue)
    cls_token = jax.random.normal(k_cls, (1, 1, embedding_dimension), dtype=jnp.float32)
    pos_embed = jax.random.normal(
        k_pos, (1, num_patches + 1, embedding_dimension), dtype=jnp.float32
    )
    # Input patch sequence (what memory.get_encoder_tensor() would return)
    x = jax.random.normal(k_x, (B, num_patches, embedding_dimension), dtype=jnp.float32)

    # min_pallas_bytes=0 forces the Pallas path even at this toy size so the
    # kernel itself is exercised (production callers keep the default
    # threshold and let XLA handle sub-256 KiB problems).
    out = patch_positional_encoding(x, cls_token, pos_embed, min_pallas_bytes=0)
    out = jax.block_until_ready(out)

    ref = reference(x, cls_token, pos_embed)
    assert out.shape == (B, num_patches + 1, embedding_dimension)
    assert jnp.allclose(out, ref, atol=1e-6, rtol=1e-6), "mismatch vs reference"

    # Also sanity-check the small-size XLA fallback path.
    out_fb = jax.block_until_ready(patch_positional_encoding(x, cls_token, pos_embed))
    assert jnp.allclose(out_fb, ref, atol=1e-6, rtol=1e-6), "fallback mismatch"

    print("KERNEL_OK")
</pallas_src>

<mosaic_0001>
module attributes {stable_mosaic.version = 11 : i64} {
  func.func @_patch_pos_enc_kernel(%arg0: i32, %arg1: memref<2x512xf32, #tpu.memory_space<vmem>>, %arg2: memref<1x32xf32, #tpu.memory_space<vmem>>, %arg3: memref<1x512xf32, #tpu.memory_space<vmem>>, %arg4: memref<2x544xf32, #tpu.memory_space<vmem>>) attributes {dimension_semantics = [#tpu.dimension_semantics<parallel>], iteration_bounds = array<i64: 1>, scalar_prefetch = 0 : i64, scratch_operands = 0 : i64, tpu.core_type = #tpu.core_type<tc>, window_params = [{transform_indices = @transform_0, window_bounds = array<i64: 2, 512>}, {pipeline_mode = #tpu.pipeline_mode<synchronous>, transform_indices = @transform_1, window_bounds = array<i64: 1, 32>}, {pipeline_mode = #tpu.pipeline_mode<synchronous>, transform_indices = @transform_2, window_bounds = array<i64: 1, 512>}, {transform_indices = @transform_3, window_bounds = array<i64: 2, 544>}]} {
    %c0 = arith.constant 0 : index
    %c0_0 = arith.constant 0 : index
    %0 = vector.load %arg2[%c0, %c0_0] : memref<1x32xf32, #tpu.memory_space<vmem>>, vector<1x32xf32>
    %1 = vector.shape_cast %0 : vector<1x32xf32> to vector<1x32xf32>
    %2 = vector.broadcast %1 : vector<1x32xf32> to vector<2x32xf32>
    %c0_1 = arith.constant 0 : index
    %c0_2 = arith.constant 0 : index
    %3 = vector.load %arg4[%c0_1, %c0_2] : memref<2x544xf32, #tpu.memory_space<vmem>>, vector<2x32xf32>
    tpu.vector_store %arg4[%c0_1, %c0_2], %2 {strides = array<i32>} : memref<2x544xf32, #tpu.memory_space<vmem>>, vector<2x32xf32>,
    %c0_3 = arith.constant 0 : index
    %c0_4 = arith.constant 0 : index
    %4 = vector.load %arg1[%c0_3, %c0_4] : memref<2x512xf32, #tpu.memory_space<vmem>>, vector<2x512xf32>
    %c0_5 = arith.constant 0 : index
    %c0_6 = arith.constant 0 : index
    %5 = vector.load %arg3[%c0_5, %c0_6] : memref<1x512xf32, #tpu.memory_space<vmem>>, vector<1x512xf32>
    %6 = vector.broadcast %5 : vector<1x512xf32> to vector<2x512xf32>
    %7 = arith.addf %4, %6 : vector<2x512xf32>
    %c0_7 = arith.constant 0 : index
    %c32 = arith.constant 32 : index
    %8 = vector.load %arg4[%c0_7, %c32] : memref<2x544xf32, #tpu.memory_space<vmem>>, vector<2x512xf32>
    tpu.vector_store %arg4[%c0_7, %c32], %7 {strides = array<i32>} : memref<2x544xf32, #tpu.memory_space<vmem>>, vector<2x512xf32>,
    return
  }
  func.func @transform_0(%arg0: i32) -> (i32, i32) {
    %c0_i32 = arith.constant 0 : i32
    %c0_i32_0 = arith.constant 0 : i32
    return %arg0, %c0_i32 : i32, i32
  }
  func.func @transform_1(%arg0: i32) -> (i32, i32) {
    %c0_i32 = arith.constant 0 : i32
    %c0_i32_0 = arith.constant 0 : i32
    %c0_i32_1 = arith.constant 0 : i32
    return %c0_i32, %c0_i32_0 : i32, i32
  }
  func.func @transform_2(%arg0: i32) -> (i32, i32) {
    %c0_i32 = arith.constant 0 : i32
    %c0_i32_0 = arith.constant 0 : i32
    %c0_i32_1 = arith.constant 0 : i32
    return %c0_i32, %c0_i32_0 : i32, i32
  }
  func.func @transform_3(%arg0: i32) -> (i32, i32) {
    %c0_i32 = arith.constant 0 : i32
    %c0_i32_0 = arith.constant 0 : i32
    return %arg0, %c0_i32 : i32, i32
  }
}

</mosaic_0001>

<llo_original>
// kernel: tpu_custom_call.1
$region0: #{tpu_custom_call.1}
  #allocation0 [shape = 'u32[]', space=smem, size = 0x4, offset = 0x4, fixed_abs, tag = 'smem constant byte address 0x4 - core index']
  #allocation1 [shape = 'u32[72,128]{1,0:T(1,128)}', space=vmem, size = 0x9000, scoped, tag = 'internal scratch']
  %s0 = inlined_call_operand.hbm [shape: f32[2,512], index: 0, kind: input, shape index: {}]
  %s1 = inlined_call_operand.hbm [shape: f32[1,32], index: 1, kind: input, shape index: {}]
  %s2 = inlined_call_operand.hbm [shape: f32[1,512], index: 2, kind: input, shape index: {}]
  %s3 = inlined_call_operand.hbm [shape: f32[2,544], index: 3, kind: output, shape index: {}]
  %s4 = sld [smem:[#allocation0]]
  $region34: #{tpu_custom_call.1} parent=0
    _
  %s6 = ssub.s32 1, %s4
  %s7 = scalar_select 0, %s6, %s4
  $region1: #{tpu_custom_call.1} parent=0
    #allocation2 [shape = 'u8[4096]{0}', space=vmem, size = 0x1000, scoped, tag = 'input window, operand 0, single buffered']
    #allocation3 [shape = 's32[1]{0}', space=sflag, size = 0x4, scoped, tag = 'scoped memory for tpu_custom_call.1']
    #allocation4 [shape = 's32[1]{0}', space=sflag, size = 0x4, scoped, tag = 'scoped memory for tpu_custom_call.1']
    #allocation5 [shape = 'u8[512]{0}', space=vmem, size = 0x400, scoped, tag = 'input window, operand 1, single buffered']
    #allocation6 [shape = 's32[1]{0}', space=sflag, size = 0x4, scoped, tag = 'scoped memory for tpu_custom_call.1']
    #allocation7 [shape = 'u8[2048]{0}', space=vmem, size = 0x800, scoped, tag = 'input window, operand 2, single buffered']
    #allocation8 [shape = 'u8[5120]{0}', space=vmem, size = 0x1400, scoped, tag = 'output window, operand 0, single buffered']
    %8 = vsyncpa [#allocation3], 0
    %9 = vsyncpa [#allocation6], 0
    %10 = vsyncpa [#allocation4], 0
    // Predicated region
    $region2: #{tpu_custom_call.1} parent=1 // pred_check
      _
    $region3: #{tpu_custom_call.1} parent=1 // pred_check_branch
      %12 = sbr.rel (0) target = $region5
    $region4: #{tpu_custom_call.1} parent=1 // pred_region
      %14 = vsyncadd [#allocation3], 0
      %s16 = sshll.u32 %s0, 4
      %s17 = int_to_ptr.hbm [resolvable:$true] %s16
      %s18 = sshll.u32 [#allocation2], 4
      %s19 = int_to_ptr.vmem [resolvable:$true] %s18
      %21 = dma.hbm_to_vmem [thread:$0]  %s17, 128, %s19, [#allocation3]
    $region5: #{tpu_custom_call.1} parent=1 // pred_fallthru
      _
    // Predicated region
    $region6: #{tpu_custom_call.1} parent=1 // pred_check
      _
    $region7: #{tpu_custom_call.1} parent=1 // pred_check_branch
      %23 = sbr.rel (0) target = $region9
    $region8: #{tpu_custom_call.1} parent=1 // pred_region
      %25 = vsyncadd [#allocation6], 0
      %s27 = sshll.u32 %s1, 4
      %s28 = int_to_ptr.hbm [resolvable:$true] %s27
      %s29 = sshll.u32 [#allocation5], 4
      %s30 = int_to_ptr.vmem [resolvable:$true] %s29
      %32 = dma.hbm_to_vmem [thread:$0]  %s28, 16, %s30, [#allocation6]
    $region9: #{tpu_custom_call.1} parent=1 // pred_fallthru
      _
    // Predicated region
    $region10: #{tpu_custom_call.1} parent=1 // pred_check
      _
    $region11: #{tpu_custom_call.1} parent=1 // pred_check_branch
      %34 = sbr.rel (0) target = $region13
    $region12: #{tpu_custom_call.1} parent=1 // pred_region
      %36 = vsyncadd [#allocation6], 0
      %s38 = sshll.u32 %s2, 4
      %s39 = int_to_ptr.hbm [resolvable:$true] %s38
      %s40 = sshll.u32 [#allocation7], 4
      %s41 = int_to_ptr.vmem [resolvable:$true] %s40
      %43 = dma.hbm_to_vmem [thread:$0]  %s39, 64, %s41, [#allocation6]
    $region13: #{tpu_custom_call.1} parent=1 // pred_fallthru
      _
    // Predicated region
    $region14: #{tpu_custom_call.1} parent=1 // pred_check
      _
    $region15: #{tpu_custom_call.1} parent=1 // pred_check_branch
      %45 = sbr.rel (0) target = $region17
    $region16: #{tpu_custom_call.1} parent=1 // pred_region
      %47 = dma.done [#allocation3], 128
    $region17: #{tpu_custom_call.1} parent=1 // pred_fallthru
      _
    // Predicated region
    $region18: #{tpu_custom_call.1} parent=1 // pred_check
      _
    $region19: #{tpu_custom_call.1} parent=1 // pred_check_branch
      %49 = sbr.rel (0) target = $region21
    $region20: #{tpu_custom_call.1} parent=1 // pred_region
      %51 = dma.done [#allocation6], 16
    $region21: #{tpu_custom_call.1} parent=1 // pred_fallthru
      _
    // Predicated region
    $region22: #{tpu_custom_call.1} parent=1 // pred_check
      _
    $region23: #{tpu_custom_call.1} parent=1 // pred_check_branch
      %53 = sbr.rel (0) target = $region25
    $region24: #{tpu_custom_call.1} parent=1 // pred_region
      %55 = dma.done [#allocation6], 64
    $region25: #{tpu_custom_call.1} parent=1 // pred_fallthru
      _
    %v56 = vld [vmem:[#allocation5] sm:$0x1]
    %v58 = vperm.slane %v56, 0
    %vm60 = vcmask 254976
    %61 = vst.msk [vmem:[#allocation8] sm:$0x3] %vm60, %v58
    %v62 = vld [vmem:[#allocation2] sm:$0xff]
    %v63 = vld [vmem:[#allocation7] sm:$0xf]
    %v65 = vperm.slane %v63, 0
    %v66 = vperm.slane %v63, 1
    %v67 = vperm.slane %v63, 2
    %v68 = vperm.slane %v63, 3
    %v69 = vrot.slane %v66, 6
    %v70 = vrot.slane %v67, 4
    %v71 = vrot.slane %v68, 2
    %vm72 = vcmask 1041408
    %v73 = vsel %vm72, %v65, %v69
    %vm74 = vcmask 1045508
    %v75 = vsel %vm74, %v70, %v71
    %vm76 = vcmask 1043456
    %v77 = vsel %vm76, %v73, %v75
    %v79 = vadd.f32 %v62, %v77
    %81 = vrot.lane.b32.xlu0 %v79, 32
    %v82 = vpop.permute.xlu0 %81
    %v83 = vrot.slane %v82, 6
    %vm84 = vcmask 261120
    %v85 = vsel %vm84, %v83, %v82
    %vm88 = vcmask 1041664
    %vm89 = vcmask 1043458
    %vm90 = vmor %vm89, %vm88
    %vm91 = vmor %vm74, %vm90
    %vm92 = vcmask 1047558
    %vm93 = vmor %vm92, %vm91
    %94 = vst.msk [vmem:[#allocation8] sm:$0xff] %vm93, %v85
    %95 = vst.msk [vmem:[#allocation8 + $0x8] sm:$0x3] %vm60, %v83
    // Predicated region
    $region26: #{tpu_custom_call.1} parent=1 // pred_check
      _
    $region27: #{tpu_custom_call.1} parent=1 // pred_check_branch
      %97 = sbr.rel (0) target = $region29
    $region28: #{tpu_custom_call.1} parent=1 // pred_region
      %99 = vsyncadd [#allocation4], 0
      %s101 = sshll.u32 [#allocation8], 4
      %s102 = int_to_ptr.vmem [resolvable:$true] %s101
      %s103 = sshll.u32 %s3, 4
      %s104 = int_to_ptr.hbm [resolvable:$true] %s103
      %106 = dma.vmem_to_hbm [thread:$0]  %s102, 160, %s104, [#allocation4]
    $region29: #{tpu_custom_call.1} parent=1 // pred_fallthru
      _
    // Predicated region
    $region30: #{tpu_custom_call.1} parent=1 // pred_check
      _
    $region31: #{tpu_custom_call.1} parent=1 // pred_check_branch
      %108 = sbr.rel (0) target = $region33
    $region32: #{tpu_custom_call.1} parent=1 // pred_region
      %110 = dma.done [#allocation4], 160
    $region33: #{tpu_custom_call.1} parent=1 // pred_fallthru
      _
    %111 = vsyncpa [#allocation3], 1
    %112 = vsyncpa [#allocation6], 1
    %113 = vsyncpa [#allocation4], 1

</llo_original>
